<compile_context>
chip_gen: v7x
topology: tpu7x:2x2x1
jax: 0.10.0
libtpu: 0.0.40
codegen_flags: <defaults>
</compile_context>

<pallas_src>
import functools
import math

import jax
import jax.numpy as jnp
from jax import lax
from jax.experimental import pallas as pl
from jax.experimental.pallas import tpu as pltpu


def _pick_tile(dim, pref):
    """Preferred tile if it evenly divides `dim`, else the full dim (always legal)."""
    return pref if (dim > pref and dim % pref == 0) else dim


# ----------------------------------------------------------------------------
# Tiled linear kernel: y = x @ W^T + b  (W passed pre-transposed as (K, N)).
# grid = (M/tm, N/tn, K/tk) with an f32 accumulator; K is the reduction axis.
# ----------------------------------------------------------------------------
def _linear_kernel(x_ref, w_ref, b_ref, o_ref, acc_ref):
    @pl.when(pl.program_id(2) == 0)
    def _init():
        acc_ref[...] = jnp.zeros_like(acc_ref)

    acc_ref[...] += jnp.dot(x_ref[...], w_ref[...],
                            preferred_element_type=jnp.float32)

    @pl.when(pl.program_id(2) == pl.num_programs(2) - 1)
    def _finalize():
        o_ref[...] = (acc_ref[...] + b_ref[...]).astype(o_ref.dtype)


def pallas_linear(x2d, w_t, b, *, tm=128, tn=128, tk=256):
    M, K = x2d.shape
    N = w_t.shape[1]
    tm = _pick_tile(M, tm)   # sublane tile (multiple of 8 or full)
    tn = _pick_tile(N, tn)   # lane tile (multiple of 128 or full)
    tk = _pick_tile(K, tk)   # lane tile (multiple of 128 or full)

    return pl.pallas_call(
        _linear_kernel,
        out_shape=jax.ShapeDtypeStruct((M, N), jnp.float32),
        grid=(M // tm, N // tn, K // tk),
        in_specs=[
            pl.BlockSpec((tm, tk), lambda i, j, k: (i, k)),
            pl.BlockSpec((tk, tn), lambda i, j, k: (k, j)),
            pl.BlockSpec((1, tn), lambda i, j, k: (0, j)),
        ],
        out_specs=pl.BlockSpec((tm, tn), lambda i, j, k: (i, j)),
        scratch_shapes=[pltpu.VMEM((tm, tn), jnp.float32)],
        compiler_params=pltpu.CompilerParams(
            dimension_semantics=("parallel", "parallel", "arbitrary")),
    )(x2d, w_t, b.reshape(1, N))


# ----------------------------------------------------------------------------
# Band-tiled sliding-window attention kernel (flash-style online softmax).
# Reproduces the torch reference semantics:
#   - scores only inside |i-j| <= window//2 band (others -> -inf)
#   - band scores that are exactly 0.0 also map to -inf (torch `where(==0)`)
#   - padding_mask == 0 masks both rows and columns with -inf
#   - softmax over keys; fully-masked rows produce zeros (torch NaN -> 0)
# q/k/v are head-packed (B, S, E) with head h at columns [h*Dh, (h+1)*Dh).
# ----------------------------------------------------------------------------
def _swa_kernel(q_ref, k_ref, v_ref, rmask_ref, cmask_ref, o_ref,
                m_sc, l_sc, acc_sc, *,
                num_heads, head_dim, half_window, scale,
                seq_tile, band_radius, num_k_tiles):
    H, Dh, T = num_heads, head_dim, seq_tile
    qi = pl.program_id(1)
    kb = pl.program_id(2)
    kt = qi - band_radius + kb            # intended (unclamped) key-tile index
    neg_inf = jnp.float32(-jnp.inf)

    @pl.when(kb == 0)
    def _init():
        m_sc[...] = jnp.full_like(m_sc, -jnp.inf)
        l_sc[...] = jnp.zeros_like(l_sc)
        acc_sc[...] = jnp.zeros_like(acc_sc)

    @pl.when(jnp.logical_and(kt >= 0, kt < num_k_tiles))
    def _accumulate():
        q = q_ref[0] * scale              # (T, E) -- 1/sqrt(Dh) folded into q
        k = k_ref[0]                      # (T, E)
        v = v_ref[0]                      # (T, E)
        keep_row = rmask_ref[0] != 0      # (T, 1)
        keep_col = cmask_ref[0] != 0      # (1, T)

        rows = qi * T + lax.broadcasted_iota(jnp.int32, (T, T), 0)
        cols = kt * T + lax.broadcasted_iota(jnp.int32, (T, T), 1)
        in_band = jnp.abs(rows - cols) <= half_window
        keep2d = jnp.logical_and(jnp.logical_and(in_band, keep_row), keep_col)

        m_prev_all = m_sc[...]            # (T, H)
        l_prev_all = l_sc[...]            # (T, H)
        acc_prev = acc_sc[...]            # (T, E)

        m_cols, l_cols, acc_cols = [], [], []
        for h in range(H):
            sl = slice(h * Dh, (h + 1) * Dh)
            # q_h @ k_h^T without materializing a transpose: contract on D.
            s = lax.dot_general(q[:, sl], k[:, sl],
                                dimension_numbers=(((1,), (1,)), ((), ())),
                                preferred_element_type=jnp.float32)  # (T, T)
            # torch reference quirk: in-band scores that are exactly 0.0 are
            # also treated as masked (-inf).
            s = jnp.where(jnp.logical_and(keep2d, s != 0.0), s, neg_inf)

            m_prev = m_prev_all[:, h:h + 1]                          # (T, 1)
            m_new = jnp.maximum(m_prev, jnp.max(s, axis=-1, keepdims=True))
            safe_m = jnp.where(m_new == neg_inf, 0.0, m_new)
            alpha = jnp.exp(m_prev - safe_m)       # 0 when m_prev == -inf
            p = jnp.exp(s - safe_m)                # 0 where s == -inf
            l_cols.append(alpha * l_prev_all[:, h:h + 1]
                          + jnp.sum(p, axis=-1, keepdims=True))
            acc_cols.append(alpha * acc_prev[:, sl]
                            + jnp.dot(p, v[:, sl],
                                      preferred_element_type=jnp.float32))
            m_cols.append(m_new)

        # Single full-width scratch stores (no narrow partial stores).
        m_sc[...] = jnp.concatenate(m_cols, axis=-1)
        l_sc[...] = jnp.concatenate(l_cols, axis=-1)
        acc_sc[...] = jnp.concatenate(acc_cols, axis=-1)

    @pl.when(kb == pl.num_programs(2) - 1)
    def _finalize():
        l = l_sc[...]                                                # (T, H)
        inv = jnp.where(l == 0.0, 0.0, pl.reciprocal(l, approx=True))
        out_cols = [acc_sc[:, h * Dh:(h + 1) * Dh] * inv[:, h:h + 1]
                    for h in range(H)]
        # One lane-dense (T, E) store per q tile, already in (B, S, E) layout.
        o_ref[0] = jnp.concatenate(out_cols, axis=-1).astype(o_ref.dtype)


def sliding_window_attention_pallas(q, k, v, padding_mask, window_size, num_heads):
    assert window_size % 2 == 0, "window size must be an even number"
    B, S, E = q.shape
    H = num_heads
    assert E % H == 0
    Dh = E // H
    half = window_size // 2
    scale = 1.0 / math.sqrt(Dh)

    T = _pick_tile(S, 128)        # seq tile for both queries and keys
    nq = S // T                   # number of q (and k) tiles
    br = -(-half // T)            # band radius measured in key tiles
    nb = 2 * br + 1               # key-tile positions visited per q tile

    mask_rows = padding_mask.astype(jnp.int32).reshape(B, S, 1)
    mask_cols = padding_mask.astype(jnp.int32).reshape(B, 1, S)

    def _kt(qi, kb):
        # clamped key-tile index (invalid positions are skipped in-kernel)
        return jnp.maximum(0, jnp.minimum(qi - br + kb, nq - 1))

    kernel = functools.partial(
        _swa_kernel, num_heads=H, head_dim=Dh, half_window=half, scale=scale,
        seq_tile=T, band_radius=br, num_k_tiles=nq)

    return pl.pallas_call(
        kernel,
        out_shape=jax.ShapeDtypeStruct((B, S, E), jnp.float32),
        grid=(B, nq, nb),
        in_specs=[
            pl.BlockSpec((1, T, E), lambda b, qi, kb: (b, qi, 0)),           # q
            pl.BlockSpec((1, T, E), lambda b, qi, kb: (b, _kt(qi, kb), 0)),  # k
            pl.BlockSpec((1, T, E), lambda b, qi, kb: (b, _kt(qi, kb), 0)),  # v
            pl.BlockSpec((1, T, 1), lambda b, qi, kb: (b, qi, 0)),           # row mask
            pl.BlockSpec((1, 1, T), lambda b, qi, kb: (b, 0, _kt(qi, kb))),  # col mask
        ],
        out_specs=pl.BlockSpec((1, T, E), lambda b, qi, kb: (b, qi, 0)),
        scratch_shapes=[
            pltpu.VMEM((T, H), jnp.float32),   # running max (per head)
            pltpu.VMEM((T, H), jnp.float32),   # running softmax denominator
            pltpu.VMEM((T, E), jnp.float32),   # running context accumulator
        ],
        compiler_params=pltpu.CompilerParams(
            dimension_semantics=("parallel", "parallel", "arbitrary")),
    )(q, k, v, mask_rows, mask_cols)


# ----------------------------------------------------------------------------
# MultiHeadAttention module (parameters created deterministically in-script).
# ----------------------------------------------------------------------------
class MultiHeadAttentionPallas:
    def __init__(self, input_dim, embed_dim, num_heads, window_size, key):
        assert embed_dim % num_heads == 0
        self.embed_dim = embed_dim
        self.num_heads = num_heads
        self.head_dim = embed_dim // num_heads
        self.window_size = window_size
        E, H, Dh = embed_dim, num_heads, self.head_dim

        k1, k2 = jax.random.split(key)
        # xavier_uniform_ weights, zero bias (as in _reset_parameters)
        bound_qkv = math.sqrt(6.0 / (input_dim + 3 * E))
        self.qkv_w = jax.random.uniform(
            k1, (3 * E, input_dim),
            minval=-bound_qkv, maxval=bound_qkv, dtype=jnp.float32)
        self.qkv_b = jnp.zeros((3 * E,), jnp.float32)

        bound_o = math.sqrt(6.0 / (E + E))
        self.o_w = jax.random.uniform(
            k2, (E, E), minval=-bound_o, maxval=bound_o, dtype=jnp.float32)
        self.o_b = jnp.zeros((E,), jnp.float32)

        # One-time permutation of the qkv projection output rows from the
        # reference interleaved layout [h0:(q,k,v), h1:(q,k,v), ...] to
        # head-major [q(all heads) | k(all heads) | v(all heads)].  The
        # forward pass then slices q/k/v as contiguous (B, S, E) column
        # slabs -- no per-forward activation transposes in HBM.
        perm = []
        for c in range(3):                       # 0 = q, 1 = k, 2 = v
            for h in range(H):
                base = h * 3 * Dh + c * Dh
                perm.extend(range(base, base + Dh))
        perm = jnp.asarray(perm, dtype=jnp.int32)
        self.qkv_wT_hm = jnp.transpose(self.qkv_w[perm])   # (input_dim, 3E)
        self.qkv_b_hm = self.qkv_b[perm]                   # (3E,)
        self.o_wT = jnp.transpose(self.o_w)                # (E, E)

    def __call__(self, x, padding_mask):
        B, S, _ = x.shape
        E = self.embed_dim

        # qkv projection (tiled Pallas matmul), head-major output layout
        qkv = pallas_linear(x.reshape(B * S, -1), self.qkv_wT_hm, self.qkv_b_hm)
        qkv = qkv.reshape(B, S, 3 * E)
        q, k, v = qkv[:, :, :E], qkv[:, :, E:2 * E], qkv[:, :, 2 * E:]

        # band-tiled sliding-window attention; ctx is (B, S, E) with the same
        # [head0 | head1 | ...] column layout the reference produces after its
        # permute(0,2,1,3).reshape(B, S, E).
        ctx = sliding_window_attention_pallas(
            q, k, v, padding_mask, self.window_size, self.num_heads)

        # output projection (tiled Pallas matmul)
        o = pallas_linear(ctx.reshape(B * S, E), self.o_wT, self.o_b)
        return o.reshape(B, S, E)


if __name__ == "__main__":
    B, S = 2, 16
    input_dim, embed_dim, num_heads, window_size = 32, 32, 4, 4

    root = jax.random.PRNGKey(0)
    kx, kp = jax.random.split(root)

    x = jax.random.normal(kx, (B, S, input_dim), dtype=jnp.float32)
    # padding mask: 1 = keep, 0 = pad; second sequence has its tail padded
    padding_mask = jnp.ones((B, S), dtype=jnp.int32).at[1, 12:].set(0)

    mha = MultiHeadAttentionPallas(input_dim, embed_dim, num_heads,
                                   window_size, key=kp)
    out = mha(x, padding_mask)
    jax.block_until_ready(out)
    assert out.shape == (B, S, embed_dim)
    assert bool(jnp.all(jnp.isfinite(out)))
    print("KERNEL_OK")
</pallas_src>

<mosaic_0001>
module attributes {stable_mosaic.version = 11 : i64} {
  func.func @_linear_kernel(%arg0: i32, %arg1: i32, %arg2: i32, %arg3: memref<32x32xf32, #tpu.memory_space<vmem>>, %arg4: memref<32x96xf32, #tpu.memory_space<vmem>>, %arg5: memref<1x96xf32, #tpu.memory_space<vmem>>, %arg6: memref<32x96xf32, #tpu.memory_space<vmem>>, %arg7: memref<32x96xf32, #tpu.memory_space<vmem>>) attributes {dimension_semantics = [#tpu.dimension_semantics<parallel>, #tpu.dimension_semantics<parallel>, #tpu.dimension_semantics<arbitrary>], iteration_bounds = array<i64: 1, 1, 1>, scalar_prefetch = 0 : i64, scratch_operands = 1 : i64, tpu.core_type = #tpu.core_type<tc>, window_params = [{transform_indices = @transform_0, window_bounds = array<i64: 32, 32>}, {transform_indices = @transform_1, window_bounds = array<i64: 32, 96>}, {transform_indices = @transform_2, window_bounds = array<i64: 1, 96>}, {transform_indices = @transform_3, window_bounds = array<i64: 32, 96>}]} {
    %c0_i32 = arith.constant 0 : i32
    %0 = arith.cmpi eq, %arg2, %c0_i32 : i32
    %1 = arith.extui %0 : i1 to i32
    %c0_i32_0 = arith.constant 0 : i32
    %2 = arith.cmpi ne, %1, %c0_i32_0 : i32
    scf.if %2 {
      %cst_10 = arith.constant 0.000000e+00 : f32
      %12 = vector.broadcast %cst_10 : f32 to vector<32x96xf32>
      %c0_11 = arith.constant 0 : index
      %c0_12 = arith.constant 0 : index
      %13 = vector.load %arg7[%c0_11, %c0_12] : memref<32x96xf32, #tpu.memory_space<vmem>>, vector<32x96xf32>
      tpu.vector_store %arg7[%c0_11, %c0_12], %12 {strides = array<i32>} : memref<32x96xf32, #tpu.memory_space<vmem>>, vector<32x96xf32>,
    } else {
    }
    %c0 = arith.constant 0 : index
    %c0_1 = arith.constant 0 : index
    %3 = vector.load %arg7[%c0, %c0_1] : memref<32x96xf32, #tpu.memory_space<vmem>>, vector<32x96xf32>
    %c0_2 = arith.constant 0 : index
    %c0_3 = arith.constant 0 : index
    %4 = vector.load %arg3[%c0_2, %c0_3] : memref<32x32xf32, #tpu.memory_space<vmem>>, vector<32x32xf32>
    %c0_4 = arith.constant 0 : index
    %c0_5 = arith.constant 0 : index
    %5 = vector.load %arg4[%c0_4, %c0_5] : memref<32x96xf32, #tpu.memory_space<vmem>>, vector<32x96xf32>
    %cst = arith.constant dense<0.000000e+00> : vector<32x96xf32>
    %6 = tpu.matmul %4, %5, %cst {dimension_numbers = #tpu.dot_dimension_numbers<[1], [0], [0], [1], [0, 0, 1, 1], [], []>} : vector<32x32xf32>, vector<32x96xf32>, vector<32x96xf32> -> vector<32x96xf32>
    %7 = arith.addf %3, %6 : vector<32x96xf32>
    %c0_6 = arith.constant 0 : index
    %c0_7 = arith.constant 0 : index
    %8 = vector.load %arg7[%c0_6, %c0_7] : memref<32x96xf32, #tpu.memory_space<vmem>>, vector<32x96xf32>
    tpu.vector_store %arg7[%c0_6, %c0_7], %7 {strides = array<i32>} : memref<32x96xf32, #tpu.memory_space<vmem>>, vector<32x96xf32>,
    %c0_i32_8 = arith.constant 0 : i32
    %9 = arith.cmpi eq, %arg2, %c0_i32_8 : i32
    %10 = arith.extui %9 : i1 to i32
    %c0_i32_9 = arith.constant 0 : i32
    %11 = arith.cmpi ne, %10, %c0_i32_9 : i32
    scf.if %11 {
      %c0_10 = arith.constant 0 : index
      %c0_11 = arith.constant 0 : index
      %12 = vector.load %arg7[%c0_10, %c0_11] : memref<32x96xf32, #tpu.memory_space<vmem>>, vector<32x96xf32>
      %c0_12 = arith.constant 0 : index
      %c0_13 = arith.constant 0 : index
      %13 = vector.load %arg5[%c0_12, %c0_13] : memref<1x96xf32, #tpu.memory_space<vmem>>, vector<1x96xf32>
      %14 = vector.broadcast %13 : vector<1x96xf32> to vector<32x96xf32>
      %15 = arith.addf %12, %14 : vector<32x96xf32>
      %c0_14 = arith.constant 0 : index
      %c0_15 = arith.constant 0 : index
      %16 = vector.load %arg6[%c0_14, %c0_15] : memref<32x96xf32, #tpu.memory_space<vmem>>, vector<32x96xf32>
      tpu.vector_store %arg6[%c0_14, %c0_15], %15 {strides = array<i32>} : memref<32x96xf32, #tpu.memory_space<vmem>>, vector<32x96xf32>,
    } else {
    }
    return
  }
  func.func @transform_0(%arg0: i32, %arg1: i32, %arg2: i32) -> (i32, i32) {
    %c0_i32 = arith.constant 0 : i32
    return %arg0, %arg2 : i32, i32
  }
  func.func @transform_1(%arg0: i32, %arg1: i32, %arg2: i32) -> (i32, i32) {
    %c0_i32 = arith.constant 0 : i32
    return %arg2, %arg1 : i32, i32
  }
  func.func @transform_2(%arg0: i32, %arg1: i32, %arg2: i32) -> (i32, i32) {
    %c0_i32 = arith.constant 0 : i32
    %c0_i32_0 = arith.constant 0 : i32
    return %c0_i32, %arg1 : i32, i32
  }
  func.func @transform_3(%arg0: i32, %arg1: i32, %arg2: i32) -> (i32, i32) {
    %c0_i32 = arith.constant 0 : i32
    return %arg0, %arg1 : i32, i32
  }
}

</mosaic_0001>

<llo_original>
// kernel: tpu_custom_call.1
$region0: #{tpu_custom_call.1}
  #allocation0 [shape = 'u32[]', space=smem, size = 0x4, offset = 0x4, fixed_abs, tag = 'smem constant byte address 0x4 - core index']
  #allocation1 [shape = 'u32[144,128]{1,0:T(1,128)}', space=vmem, size = 0x12000, scoped, tag = 'internal scratch']
  #allocation2 [shape = 'f32[32,96]{1,0:T(8,128)}', space=vmem, size = 0x4000, scoped, tag = 'scratch operand']
  %s0 = inlined_call_operand.hbm [shape: f32[32,32], index: 0, kind: input, shape index: {}]
  %s1 = inlined_call_operand.hbm [shape: f32[32,96], index: 1, kind: input, shape index: {}]
  %s2 = inlined_call_operand.vmem [shape: f32[1,96], index: 2, kind: input, shape index: {}]
  %s3 = inlined_call_operand.hbm [shape: f32[32,96], index: 3, kind: output, shape index: {}]
  %s4 = sld [smem:[#allocation0]]
  $region38: #{tpu_custom_call.1} parent=0
    _
  %s6 = ssub.s32 1, %s4
  %s7 = scalar_select 0, %s6, %s4
  $region1: #{tpu_custom_call.1} parent=0
    #allocation3 [shape = 'u8[16384]{0}', space=vmem, size = 0x4000, scoped, tag = 'input window, operand 0, single buffered']
    #allocation4 [shape = 's32[1]{0}', space=sflag, size = 0x4, scoped, tag = 'scoped memory for tpu_custom_call.1']
    #allocation5 [shape = 's32[1]{0}', space=sflag, size = 0x4, scoped, tag = 'scoped memory for tpu_custom_call.1']
    #allocation6 [shape = 'u8[16384]{0}', space=vmem, size = 0x4000, scoped, tag = 'input window, operand 1, single buffered']
    #allocation7 [shape = 's32[1]{0}', space=sflag, size = 0x4, scoped, tag = 'scoped memory for tpu_custom_call.1']
    #allocation8 [shape = 'u8[16384]{0}', space=vmem, size = 0x4000, scoped, tag = 'output window, operand 0, single buffered']
    %8 = vsyncpa [#allocation4], 0
    %9 = vsyncpa [#allocation7], 0
    %10 = vsyncpa [#allocation5], 0
    // Predicated region
    $region2: #{tpu_custom_call.1} parent=1 // pred_check
      _
    $region3: #{tpu_custom_call.1} parent=1 // pred_check_branch
      %12 = sbr.rel (0) target = $region5
    $region4: #{tpu_custom_call.1} parent=1 // pred_region
      %s14 = ssub.s32 512, 512
      %15 = vsyncadd [#allocation4], %s14
      %s16 = sshll.u32 [#allocation3], 4
      %s17 = int_to_ptr.vmem [resolvable:$true] %s16
      %22 = dma.hbm_to_vmem [thread:$0]  %s0, 512, %s17, [#allocation4], 128, 128, 8
    $region5: #{tpu_custom_call.1} parent=1 // pred_fallthru
      _
    // Predicated region
    $region6: #{tpu_custom_call.1} parent=1 // pred_check
      _
    $region7: #{tpu_custom_call.1} parent=1 // pred_check_branch
      %24 = sbr.rel (0) target = $region9
    $region8: #{tpu_custom_call.1} parent=1 // pred_region
      %s26 = ssub.s32 512, 512
      %27 = vsyncadd [#allocation7], %s26
      %s28 = sshll.u32 [#allocation6], 4
      %s29 = int_to_ptr.vmem [resolvable:$true] %s28
      %34 = dma.hbm_to_vmem [thread:$0]  %s1, 512, %s29, [#allocation7], 128, 128, 8
    $region9: #{tpu_custom_call.1} parent=1 // pred_fallthru
      _
    // Predicated region
    $region10: #{tpu_custom_call.1} parent=1 // pred_check
      _
    $region11: #{tpu_custom_call.1} parent=1 // pred_check_branch
      %36 = sbr.rel (0) target = $region13
    $region12: #{tpu_custom_call.1} parent=1 // pred_region
      _
    $region13: #{tpu_custom_call.1} parent=1 // pred_fallthru
      _
    // Predicated region
    $region14: #{tpu_custom_call.1} parent=1 // pred_check
      _
    $region15: #{tpu_custom_call.1} parent=1 // pred_check_branch
      %38 = sbr.rel (0) target = $region17
    $region16: #{tpu_custom_call.1} parent=1 // pred_region
      %39 = dma.done [#allocation4], 512
    $region17: #{tpu_custom_call.1} parent=1 // pred_fallthru
      _
    // Predicated region
    $region18: #{tpu_custom_call.1} parent=1 // pred_check
      _
    $region19: #{tpu_custom_call.1} parent=1 // pred_check_branch
      %41 = sbr.rel (0) target = $region21
    $region20: #{tpu_custom_call.1} parent=1 // pred_region
      %42 = dma.done [#allocation7], 512
    $region21: #{tpu_custom_call.1} parent=1 // pred_fallthru
      _
    %p43 = scmp.eq.s32.totalorder 0, 0
    // Predicated region
    $region22: #{tpu_custom_call.1} parent=1 // pred_check
      %p44 = pneg %p43
    $region23: #{tpu_custom_call.1} parent=1 // pred_check_branch
      %46 = sbr.rel (%p44) target = $region25
    $region24: #{tpu_custom_call.1} parent=1 // pred_region
      %vm47 = vcmask 785408
      %48 = vst.msk [vmem:[#allocation2] sm:$0xff] %vm47, 0.0
      %49 = vst.msk [vmem:[#allocation2 + $0x8] sm:$0xff] %vm47, 0.0
      %50 = vst.msk [vmem:[#allocation2 + $0x10] sm:$0xff] %vm47, 0.0
      %51 = vst.msk [vmem:[#allocation2 + $0x18] sm:$0xff] %vm47, 0.0
    $region25: #{tpu_custom_call.1} parent=1 // pred_fallthru
      _
    %v52 = vld [vmem:[#allocation2] sm:$0xff]
    %v53 = vld [vmem:[#allocation2 + $0x8] sm:$0xff]
    %v54 = vld [vmem:[#allocation2 + $0x10] sm:$0xff]
    %v55 = vld [vmem:[#allocation2 + $0x18] sm:$0xff]
    %v56 = vld [vmem:[#allocation3] sm:$0xff]
    %v57 = vld [vmem:[#allocation3 + $0x8] sm:$0xff]
    %v58 = vld [vmem:[#allocation3 + $0x10] sm:$0xff]
    %v59 = vld [vmem:[#allocation3 + $0x18] sm:$0xff]
    %v60 = vld [vmem:[#allocation6] sm:$0xff]
    %v61 = vld [vmem:[#allocation6 + $0x8] sm:$0xff]
    %v62 = vld [vmem:[#allocation6 + $0x10] sm:$0xff]
    %v63 = vld [vmem:[#allocation6 + $0x18] sm:$0xff]
    %vm64 = vcmask 261120
    %v66 = vsel %vm64, %v56, 0
    %v69 = vsel %vm64, %v57, 0
    %v72 = vsel %vm64, %v58, 0
    %v75 = vsel %vm64, %v59, 0
    %77 = vmatprep.subr.mxu0 0.0
    %78 = vmatpush1.msra.mxu0 %v60
    %79 = vmatprep.subr.mxu0 0.0
    %80 = vmatpush1.msra.mxu0 %v61
    %81 = vmatprep.subr.mxu0 0.0
    %82 = vmatpush1.msra.mxu0 %v62
    %83 = vmatprep.subr.mxu0 0.0
    %84 = vmatpush1.msra.mxu0 %v63
    %85 = vmatprep.subr.mxu0 0.0
    %86 = vmatpush1.msra.mxu0 0.0
    %87 = vmatprep.subr.mxu0 0.0
    %88 = vmatpush1.msra.mxu0 0.0
    %89 = vmatprep.subr.mxu0 0.0
    %90 = vmatpush1.msra.mxu0 0.0
    %91 = vmatprep.subr.mxu0 0.0
    %92 = vmatpush1.msra.mxu0 0.0
    %93 = vmatprep.subr.mxu0 0.0
    %94 = vmatpush1.msra.mxu0 0.0
    %95 = vmatprep.subr.mxu0 0.0
    %96 = vmatpush1.msra.mxu0 0.0
    %97 = vmatprep.subr.mxu0 0.0
    %98 = vmatpush1.msra.mxu0 0.0
    %99 = vmatprep.subr.mxu0 0.0
    %100 = vmatpush1.msra.mxu0 0.0
    %101 = vmatprep.subr.mxu0 0.0
    %102 = vmatpush1.msra.mxu0 0.0
    %103 = vmatprep.subr.mxu0 0.0
    %104 = vmatpush1.msra.mxu0 0.0
    %105 = vmatprep.subr.mxu0 0.0
    %106 = vmatpush1.msra.mxu0 0.0
    %107 = vmatprep.subr.mxu0 0.0
    %108 = vmatpush1.msra.mxu0 0.0
    %109 = vmatprep.subr.mxu0 0.0
    %110 = vmatpush1.msra.mxu0 0.0
    %111 = vmatprep.subr.mxu0 0.0
    %112 = vmatpush1.msra.mxu0 0.0
    %113 = vmatprep.subr.mxu0 0.0
    %114 = vmatpush1.msra.mxu0 0.0
    %115 = vmatprep.subr.mxu0 0.0
    %116 = vmatpush1.msra.mxu0 0.0
    %117 = vmatprep.subr.mxu0 0.0
    %118 = vmatpush1.msra.mxu0 0.0
    %119 = vmatprep.subr.mxu0 0.0
    %120 = vmatpush1.msra.mxu0 0.0
    %121 = vmatprep.subr.mxu0 0.0
    %122 = vmatpush1.msra.mxu0 0.0
    %123 = vmatprep.subr.mxu0 0.0
    %124 = vmatpush1.msra.mxu0 0.0
    %125 = vmatprep.subr.mxu0 0.0
    %126 = vmatpush1.msra.mxu0 0.0
    %127 = vmatprep.subr.mxu0 0.0
    %128 = vmatpush1.msra.mxu0 0.0
    %129 = vmatprep.subr.mxu0 0.0
    %130 = vmatpush1.msra.mxu0 0.0
    %131 = vmatprep.subr.mxu0 0.0
    %132 = vmatpush1.msra.mxu0 0.0
    %133 = vmatprep.subr.mxu0 0.0
    %134 = vmatpush1.msra.mxu0 0.0
    %135 = vmatprep.subr.mxu0 0.0
    %136 = vmatpush1.msra.mxu0 0.0
    %137 = vmatprep.subr.mxu0 0.0
    %138 = vmatpush1.msra.mxu0 0.0
    %139 = vmatprep.subr.mxu0 0.0
    %140 = vmatpush1.msra.mxu0 0.0
    %141 = vmatprep.mubr.f32.mxu0 0.0
    %142 = vmatmul.mubr.f32.gmra.mrb[0].mxu0 %v66
    %v143 = vpop.f32.mrb[0].mxu0
    %v144 = vadd.f32 0.0, %v143
    %v145 = vpop.f32.mrb[0].mxu0
    %146 = vmatprep.mubr.f32.mxu0 0.0
    %147 = vmatmul.mubr.f32.gmra.mrb[0].mxu0 %v69
    %v148 = vpop.f32.mrb[0].mxu0
    %v149 = vadd.f32 0.0, %v148
    %v150 = vpop.f32.mrb[0].mxu0
    %151 = vmatprep.mubr.f32.mxu0 0.0
    %152 = vmatmul.mubr.f32.gmra.mrb[0].mxu0 %v72
    %v153 = vpop.f32.mrb[0].mxu0
    %v154 = vadd.f32 0.0, %v153
    %v155 = vpop.f32.mrb[0].mxu0
    %156 = vmatprep.mubr.f32.mxu0 0.0
    %157 = vmatmul.mubr.f32.gmra.mrb[0].mxu0 %v75
    %v158 = vpop.f32.mrb[0].mxu0
    %v159 = vadd.f32 0.0, %v158
    %v160 = vpop.f32.mrb[0].mxu0
    %161 = vdwg.mxu0
    %v162 = vadd.f32 %v52, %v144
    %v163 = vadd.f32 %v53, %v149
    %v164 = vadd.f32 %v54, %v154
    %v165 = vadd.f32 %v55, %v159
    %vm166 = vcmask 785408
    %167 = vst.msk [vmem:[#allocation2] sm:$0xff] %vm166, %v162
    %168 = vst.msk [vmem:[#allocation2 + $0x8] sm:$0xff] %vm166, %v163
    %169 = vst.msk [vmem:[#allocation2 + $0x10] sm:$0xff] %vm166, %v164
    %170 = vst.msk [vmem:[#allocation2 + $0x18] sm:$0xff] %vm166, %v165
    // Predicated region
    $region26: #{tpu_custom_call.1} parent=1 // pred_check
      %p171 = pneg %p43
    $region27: #{tpu_custom_call.1} parent=1 // pred_check_branch
      %173 = sbr.rel (%p171) target = $region29
    $region28: #{tpu_custom_call.1} parent=1 // pred_region
      %v174 = vld [vmem:[#allocation2] sm:$0xff]
      %v175 = vld [vmem:[#allocation2 + $0x8] sm:$0xff]
      %v176 = vld [vmem:[#allocation2 + $0x10] sm:$0xff]
      %v177 = vld [vmem:[#allocation2 + $0x18] sm:$0xff]
      %v178 = vld [vmem:[%s2] sm:$0x1]
      %v180 = vlaneseq
      %v181 = vshrl.u32 %v180, 7
      %v182 = vsub.s32 0, %v181
      %v183 = vrot.slane %v178, %v182
      %v185 = vadd.f32 %v174, %v183
      %v186 = vadd.f32 %v175, %v183
      %v187 = vadd.f32 %v176, %v183
      %v188 = vadd.f32 %v177, %v183
      %189 = vst.msk [vmem:[#allocation8] sm:$0xff] %vm166, %v185
      %190 = vst.msk [vmem:[#allocation8 + $0x8] sm:$0xff] %vm166, %v186
      %191 = vst.msk [vmem:[#allocation8 + $0x10] sm:$0xff] %vm166, %v187
      %192 = vst.msk [vmem:[#allocation8 + $0x18] sm:$0xff] %vm166, %v188
    $region29: #{tpu_custom_call.1} parent=1 // pred_fallthru
      _
    // Predicated region
    $region30: #{tpu_custom_call.1} parent=1 // pred_check
      _
    $region31: #{tpu_custom_call.1} parent=1 // pred_check_branch
      %194 = sbr.rel (0) target = $region33
    $region32: #{tpu_custom_call.1} parent=1 // pred_region
      %s196 = ssub.s32 512, 512
      %197 = vsyncadd [#allocation5], %s196
      %s198 = sshll.u32 [#allocation8], 4
      %s199 = int_to_ptr.vmem [resolvable:$true] %s198
      %204 = dma.vmem_to_hbm [thread:$0]  %s199, 512, %s3, [#allocation5], 128, 128, 8
    $region33: #{tpu_custom_call.1} parent=1 // pred_fallthru
      _
    // Predicated region
    $region34: #{tpu_custom_call.1} parent=1 // pred_check
      _
    $region35: #{tpu_custom_call.1} parent=1 // pred_check_branch
      %206 = sbr.rel (0) target = $region37
    $region36: #{tpu_custom_call.1} parent=1 // pred_region
      %207 = dma.done [#allocation5], 512
    $region37: #{tpu_custom_call.1} parent=1 // pred_fallthru
      _
    %208 = vsyncpa [#allocation4], 1
    %209 = vsyncpa [#allocation7], 1
    %210 = vsyncpa [#allocation5], 1

</llo_original>
